<compile_context>
chip_gen: v7x
topology: tpu7x:2x2x1
jax: 0.10.0
libtpu: 0.0.40
codegen_flags: <defaults>
</compile_context>

<pallas_src>
import jax
import jax.numpy as jnp
from jax.experimental import pallas as pl
from jax.experimental.pallas import tpu as pltpu

BN_EPS = 1e-5
LEAKY_SLOPE = 0.01  # nn.LeakyReLU default


# ---------------------------------------------------------------------------
# Kernel
# ---------------------------------------------------------------------------
def fcnet_kernel(
    x_ref,
    w1_ref, b1_ref,
    w2_ref, b2_ref,
    w3_ref, b3_ref,
    w4_ref, b4_ref,
    o_ref,
):
    # Weights are bf16 (BN folded on host); dots accumulate in f32 on the MXU,
    # bias add + activations stay in f32 on the VPU.
    x = x_ref[...]

    # Linear+BN folded -> LeakyReLU   (Dropout: identity in eval mode)
    h = jnp.dot(x.astype(jnp.bfloat16), w1_ref[...],
                preferred_element_type=jnp.float32) + b1_ref[...]
    h = jnp.where(h > 0, h, LEAKY_SLOPE * h)

    # Linear+BN folded -> LeakyReLU
    h = jnp.dot(h.astype(jnp.bfloat16), w2_ref[...],
                preferred_element_type=jnp.float32) + b2_ref[...]
    h = jnp.where(h > 0, h, LEAKY_SLOPE * h)

    # Linear+BN folded -> ReLU
    h = jnp.dot(h.astype(jnp.bfloat16), w3_ref[...],
                preferred_element_type=jnp.float32) + b3_ref[...]
    h = jnp.maximum(h, 0.0)

    # Final Linear (output padded to a lane-dense 128-multiple)
    h = jnp.dot(h.astype(jnp.bfloat16), w4_ref[...],
                preferred_element_type=jnp.float32) + b4_ref[...]
    o_ref[...] = h.astype(o_ref.dtype)


# ---------------------------------------------------------------------------
# Host-side helpers
# ---------------------------------------------------------------------------
def _round_up(x, m):
    return (x + m - 1) // m * m


def _pad_to(arr, shape):
    pads = [(0, t - s) for s, t in zip(arr.shape, shape)]
    return jnp.pad(arr, pads)


def _fold_bn(w, b, g, be, m, v):
    """Fold eval-mode BatchNorm1d into the preceding Linear (w:(in,out), b:(1,out))."""
    s = g * jax.lax.rsqrt(v + BN_EPS)          # (1, out)
    return w * s, (b - m) * s + be


ROW_ALIGN = 16  # bf16 dot inputs pack (16,128) per vreg


def _choose_batch_tile(B):
    # Single grid step for small/medium B: weights are fetched once, no
    # per-step overhead duplication, MXU M-dim gets the whole batch.
    if B <= 512:
        return _round_up(max(B, 1), ROW_ALIGN)
    # Large B: tiles of up to 512 rows amortize the ~0.35 us per-step overhead
    # and let the "parallel" batch axis shard across v7x's two TensorCores.
    return min(512, _round_up(pl.cdiv(B, 2), ROW_ALIGN))


# ---------------------------------------------------------------------------
# Wrapper
# ---------------------------------------------------------------------------
def fcnet_forward(x, params, *, batch_tile=None):
    """x: (B, input_size) f32.  params: dict from init_params (eval-mode fwd)."""
    B, input_size = x.shape
    output_size = params["w4"].shape[1]

    # ---- fold BN into linear layers (host side, once) ----
    ws, bs = [], []
    for idx in (1, 2, 3):
        w, b = _fold_bn(
            params[f"w{idx}"], params[f"b{idx}"],
            params[f"g{idx}"], params[f"be{idx}"],
            params[f"m{idx}"], params[f"v{idx}"],
        )
        ws.append(w)
        bs.append(b)
    ws.append(params["w4"])
    bs.append(params["b4"])

    # ---- pad every feature dim to a lane-dense multiple of 128 ----
    dims = [input_size] + [w.shape[1] for w in ws]
    pdims = [_round_up(d, 128) for d in dims]
    # Weights in bf16 (halves DMA + VMEM); biases stay f32.
    ws = [_pad_to(w, (pdims[i], pdims[i + 1])).astype(jnp.bfloat16)
          for i, w in enumerate(ws)]
    bs = [_pad_to(b, (1, pdims[i + 1])) for i, b in enumerate(bs)]

    # ---- batch tiling ----
    if batch_tile is None:
        batch_tile = _choose_batch_tile(B)
    batch_tile = _round_up(batch_tile, ROW_ALIGN)
    B_pad = _round_up(B, batch_tile)
    x_pad = _pad_to(x, (B_pad, pdims[0]))
    grid = (B_pad // batch_tile,)

    # ---- specs ----
    # x tile double-buffered (default); constant weights/biases single-buffered.
    in_specs = [pl.BlockSpec((batch_tile, pdims[0]), lambda i: (i, 0))]
    ordered = []
    for w, b in zip(ws, bs):
        in_specs.append(pl.BlockSpec(w.shape, lambda i: (0, 0),
                                     pipeline_mode=pl.Buffered(1)))
        in_specs.append(pl.BlockSpec(b.shape, lambda i: (0, 0),
                                     pipeline_mode=pl.Buffered(1)))
        ordered += [w, b]
    out_spec = pl.BlockSpec((batch_tile, pdims[-1]), lambda i: (i, 0))

    # ---- cost estimate (bf16 weights counted at 2 B/elt) ----
    flops = 2 * B_pad * sum(pdims[i] * pdims[i + 1] for i in range(4))
    bytes_accessed = (
        x_pad.size * 4
        + sum(w.size * 2 for w in ws)
        + sum(b.size * 4 for b in bs)
        + B_pad * pdims[-1] * 4
    )

    # ---- explicit VMEM budget (valid on v5e/v6e/v7x; cap at 64 MiB) ----
    weight_bytes = sum(w.size * 2 for w in ws)           # bf16, single-buffered
    bias_bytes = sum(b.size * 4 for b in bs)
    x_tile_bytes = batch_tile * pdims[0] * 4
    out_tile_bytes = batch_tile * pdims[-1] * 4
    act_bytes = batch_tile * max(pdims) * 4              # largest intermediate
    vmem_needed = (2 * x_tile_bytes + 2 * out_tile_bytes
                   + weight_bytes + bias_bytes + 4 * act_bytes)
    vmem_limit = int(min(max(2 * vmem_needed, 16 << 20), 64 << 20))

    out = pl.pallas_call(
        fcnet_kernel,
        out_shape=jax.ShapeDtypeStruct((B_pad, pdims[-1]), jnp.float32),
        grid_spec=pltpu.PrefetchScalarGridSpec(
            num_scalar_prefetch=0,
            grid=grid,
            in_specs=in_specs,
            out_specs=out_spec,
        ),
        compiler_params=pltpu.CompilerParams(
            dimension_semantics=("parallel",),
            vmem_limit_bytes=vmem_limit,
        ),
        cost_estimate=pl.CostEstimate(
            flops=int(flops), transcendentals=0, bytes_accessed=int(bytes_accessed)
        ),
    )(x_pad, *ordered)

    # Padded rows hold bias-only garbage; slice them (and padded lanes) away.
    return out[:B, :output_size]


# ---------------------------------------------------------------------------
# Parameters / reference
# ---------------------------------------------------------------------------
def init_params(key, input_size, hidden_size, output_size):
    """Deterministic synthetic parameters (PyTorch Linear weight is (out,in);
    stored here as (in,out) so the kernel computes x @ W)."""
    dims = [(input_size, hidden_size), (hidden_size, 512), (512, 256),
            (256, output_size)]
    params = {}
    keys = jax.random.split(key, 32)
    ki = 0
    for idx, (din, dout) in enumerate(dims, start=1):
        scale = 1.0 / jnp.sqrt(jnp.float32(din))
        params[f"w{idx}"] = (
            jax.random.uniform(keys[ki], (din, dout), jnp.float32, -1.0, 1.0) * scale
        )
        ki += 1
        params[f"b{idx}"] = (
            jax.random.uniform(keys[ki], (1, dout), jnp.float32, -1.0, 1.0) * scale
        )
        ki += 1
        if idx <= 3:  # BatchNorm1d affine params + running stats
            params[f"g{idx}"] = 1.0 + 0.1 * jax.random.normal(keys[ki], (1, dout), jnp.float32)
            ki += 1
            params[f"be{idx}"] = 0.1 * jax.random.normal(keys[ki], (1, dout), jnp.float32)
            ki += 1
            params[f"m{idx}"] = 0.05 * jax.random.normal(keys[ki], (1, dout), jnp.float32)
            ki += 1
            params[f"v{idx}"] = 0.5 + jnp.abs(jax.random.normal(keys[ki], (1, dout), jnp.float32))
            ki += 1
    return params


def _bn_ref(h, gamma, beta, mean, var):
    inv = gamma * jax.lax.rsqrt(var + BN_EPS)
    return (h - mean) * inv + beta


def fcnet_reference(x, p):
    """Pure-JAX f32 reference (eval-mode semantics, unfolded BN)."""
    h = x @ p["w1"] + p["b1"]
    h = _bn_ref(h, p["g1"], p["be1"], p["m1"], p["v1"])
    h = jnp.where(h > 0, h, LEAKY_SLOPE * h)
    h = h @ p["w2"] + p["b2"]
    h = _bn_ref(h, p["g2"], p["be2"], p["m2"], p["v2"])
    h = jnp.where(h > 0, h, LEAKY_SLOPE * h)
    h = h @ p["w3"] + p["b3"]
    h = _bn_ref(h, p["g3"], p["be3"], p["m3"], p["v3"])
    h = jnp.maximum(h, 0.0)
    return h @ p["w4"] + p["b4"]


if __name__ == "__main__":
    input_size, hidden_size, output_size = 64, 128, 16
    batch = 16

    key = jax.random.PRNGKey(0)
    kx, kp = jax.random.split(key)
    x = jax.random.normal(kx, (batch, input_size), jnp.float32)
    params = init_params(kp, input_size, hidden_size, output_size)

    out = fcnet_forward(x, params)
    out = jax.block_until_ready(out)

    ref = fcnet_reference(x, params)
    assert out.shape == (batch, output_size)
    # Tolerance loosened for bf16 weights/dot inputs (f32 accumulation).
    assert jnp.allclose(out, ref, atol=5e-2, rtol=5e-2), (
        float(jnp.max(jnp.abs(out - ref))))

    print("KERNEL_OK")
</pallas_src>

<mosaic_0001>
module attributes {stable_mosaic.version = 11 : i64} {
  func.func @fcnet_kernel(%arg0: i32, %arg1: memref<16x128xf32, #tpu.memory_space<vmem>>, %arg2: memref<128x128xbf16, #tpu.memory_space<vmem>>, %arg3: memref<1x128xf32, #tpu.memory_space<vmem>>, %arg4: memref<128x512xbf16, #tpu.memory_space<vmem>>, %arg5: memref<1x512xf32, #tpu.memory_space<vmem>>, %arg6: memref<512x256xbf16, #tpu.memory_space<vmem>>, %arg7: memref<1x256xf32, #tpu.memory_space<vmem>>, %arg8: memref<256x128xbf16, #tpu.memory_space<vmem>>, %arg9: memref<1x128xf32, #tpu.memory_space<vmem>>, %arg10: memref<16x128xf32, #tpu.memory_space<vmem>>) attributes {dimension_semantics = [#tpu.dimension_semantics<parallel>], iteration_bounds = array<i64: 1>, scalar_prefetch = 0 : i64, scratch_operands = 0 : i64, tpu.core_type = #tpu.core_type<tc>, window_params = [{transform_indices = @transform_0, window_bounds = array<i64: 16, 128>}, {pipeline_mode = #tpu.pipeline_mode<synchronous>, transform_indices = @transform_1, window_bounds = array<i64: 128, 128>}, {pipeline_mode = #tpu.pipeline_mode<synchronous>, transform_indices = @transform_2, window_bounds = array<i64: 1, 128>}, {pipeline_mode = #tpu.pipeline_mode<synchronous>, transform_indices = @transform_3, window_bounds = array<i64: 128, 512>}, {pipeline_mode = #tpu.pipeline_mode<synchronous>, transform_indices = @transform_4, window_bounds = array<i64: 1, 512>}, {pipeline_mode = #tpu.pipeline_mode<synchronous>, transform_indices = @transform_5, window_bounds = array<i64: 512, 256>}, {pipeline_mode = #tpu.pipeline_mode<synchronous>, transform_indices = @transform_6, window_bounds = array<i64: 1, 256>}, {pipeline_mode = #tpu.pipeline_mode<synchronous>, transform_indices = @transform_7, window_bounds = array<i64: 256, 128>}, {pipeline_mode = #tpu.pipeline_mode<synchronous>, transform_indices = @transform_8, window_bounds = array<i64: 1, 128>}, {transform_indices = @transform_9, window_bounds = array<i64: 16, 128>}]} {
    %c0 = arith.constant 0 : index
    %c0_0 = arith.constant 0 : index
    %0 = vector.load %arg1[%c0, %c0_0] : memref<16x128xf32, #tpu.memory_space<vmem>>, vector<16x128xf32>
    %1 = arith.truncf %0 : vector<16x128xf32> to vector<16x128xbf16>
    %c0_1 = arith.constant 0 : index
    %c0_2 = arith.constant 0 : index
    %2 = vector.load %arg2[%c0_1, %c0_2] : memref<128x128xbf16, #tpu.memory_space<vmem>>, vector<128x128xbf16>
    %cst = arith.constant dense<0.000000e+00> : vector<16x128xf32>
    %3 = tpu.matmul %1, %2, %cst {dimension_numbers = #tpu.dot_dimension_numbers<[1], [0], [0], [1], [0, 0, 1, 1], [], []>} : vector<16x128xbf16>, vector<128x128xbf16>, vector<16x128xf32> -> vector<16x128xf32>
    %c0_3 = arith.constant 0 : index
    %c0_4 = arith.constant 0 : index
    %4 = vector.load %arg3[%c0_3, %c0_4] : memref<1x128xf32, #tpu.memory_space<vmem>>, vector<1x128xf32>
    %5 = vector.broadcast %4 : vector<1x128xf32> to vector<16x128xf32>
    %6 = arith.addf %3, %5 : vector<16x128xf32>
    %cst_5 = arith.constant 0.000000e+00 : f32
    %7 = vector.broadcast %cst_5 : f32 to vector<16x128xf32>
    %8 = arith.cmpf ogt, %6, %7 : vector<16x128xf32>
    %cst_6 = arith.constant 0.00999999977 : f32
    %9 = vector.broadcast %cst_6 : f32 to vector<16x128xf32>
    %10 = arith.mulf %9, %6 : vector<16x128xf32>
    %11 = arith.select %8, %6, %10 : vector<16x128xi1>, vector<16x128xf32>
    %12 = arith.truncf %11 : vector<16x128xf32> to vector<16x128xbf16>
    %c0_7 = arith.constant 0 : index
    %c0_8 = arith.constant 0 : index
    %13 = vector.load %arg4[%c0_7, %c0_8] : memref<128x512xbf16, #tpu.memory_space<vmem>>, vector<128x512xbf16>
    %cst_9 = arith.constant dense<0.000000e+00> : vector<16x512xf32>
    %14 = tpu.matmul %12, %13, %cst_9 {dimension_numbers = #tpu.dot_dimension_numbers<[1], [0], [0], [1], [0, 0, 1, 1], [], []>} : vector<16x128xbf16>, vector<128x512xbf16>, vector<16x512xf32> -> vector<16x512xf32>
    %c0_10 = arith.constant 0 : index
    %c0_11 = arith.constant 0 : index
    %15 = vector.load %arg5[%c0_10, %c0_11] : memref<1x512xf32, #tpu.memory_space<vmem>>, vector<1x512xf32>
    %16 = vector.broadcast %15 : vector<1x512xf32> to vector<16x512xf32>
    %17 = arith.addf %14, %16 : vector<16x512xf32>
    %cst_12 = arith.constant 0.000000e+00 : f32
    %18 = vector.broadcast %cst_12 : f32 to vector<16x512xf32>
    %19 = arith.cmpf ogt, %17, %18 : vector<16x512xf32>
    %cst_13 = arith.constant 0.00999999977 : f32
    %20 = vector.broadcast %cst_13 : f32 to vector<16x512xf32>
    %21 = arith.mulf %20, %17 : vector<16x512xf32>
    %22 = arith.select %19, %17, %21 : vector<16x512xi1>, vector<16x512xf32>
    %23 = arith.truncf %22 : vector<16x512xf32> to vector<16x512xbf16>
    %c0_14 = arith.constant 0 : index
    %c0_15 = arith.constant 0 : index
    %24 = vector.load %arg6[%c0_14, %c0_15] : memref<512x256xbf16, #tpu.memory_space<vmem>>, vector<512x256xbf16>
    %cst_16 = arith.constant dense<0.000000e+00> : vector<16x256xf32>
    %25 = tpu.matmul %23, %24, %cst_16 {dimension_numbers = #tpu.dot_dimension_numbers<[1], [0], [0], [1], [0, 0, 1, 1], [], []>} : vector<16x512xbf16>, vector<512x256xbf16>, vector<16x256xf32> -> vector<16x256xf32>
    %c0_17 = arith.constant 0 : index
    %c0_18 = arith.constant 0 : index
    %26 = vector.load %arg7[%c0_17, %c0_18] : memref<1x256xf32, #tpu.memory_space<vmem>>, vector<1x256xf32>
    %27 = vector.broadcast %26 : vector<1x256xf32> to vector<16x256xf32>
    %28 = arith.addf %25, %27 : vector<16x256xf32>
    %cst_19 = arith.constant 0.000000e+00 : f32
    %29 = vector.broadcast %cst_19 : f32 to vector<16x256xf32>
    %30 = arith.maximumf %28, %29 : vector<16x256xf32>
    %31 = arith.truncf %30 : vector<16x256xf32> to vector<16x256xbf16>
    %c0_20 = arith.constant 0 : index
    %c0_21 = arith.constant 0 : index
    %32 = vector.load %arg8[%c0_20, %c0_21] : memref<256x128xbf16, #tpu.memory_space<vmem>>, vector<256x128xbf16>
    %cst_22 = arith.constant dense<0.000000e+00> : vector<16x128xf32>
    %33 = tpu.matmul %31, %32, %cst_22 {dimension_numbers = #tpu.dot_dimension_numbers<[1], [0], [0], [1], [0, 0, 1, 1], [], []>} : vector<16x256xbf16>, vector<256x128xbf16>, vector<16x128xf32> -> vector<16x128xf32>
    %c0_23 = arith.constant 0 : index
    %c0_24 = arith.constant 0 : index
    %34 = vector.load %arg9[%c0_23, %c0_24] : memref<1x128xf32, #tpu.memory_space<vmem>>, vector<1x128xf32>
    %35 = vector.broadcast %34 : vector<1x128xf32> to vector<16x128xf32>
    %36 = arith.addf %33, %35 : vector<16x128xf32>
    %c0_25 = arith.constant 0 : index
    %c0_26 = arith.constant 0 : index
    %37 = vector.load %arg10[%c0_25, %c0_26] : memref<16x128xf32, #tpu.memory_space<vmem>>, vector<16x128xf32>
    tpu.vector_store %arg10[%c0_25, %c0_26], %36 {strides = array<i32>} : memref<16x128xf32, #tpu.memory_space<vmem>>, vector<16x128xf32>,
    return
  }
  func.func @transform_0(%arg0: i32) -> (i32, i32) {
    %c0_i32 = arith.constant 0 : i32
    %c0_i32_0 = arith.constant 0 : i32
    return %arg0, %c0_i32 : i32, i32
  }
  func.func @transform_1(%arg0: i32) -> (i32, i32) {
    %c0_i32 = arith.constant 0 : i32
    %c0_i32_0 = arith.constant 0 : i32
    %c0_i32_1 = arith.constant 0 : i32
    return %c0_i32, %c0_i32_0 : i32, i32
  }
  func.func @transform_2(%arg0: i32) -> (i32, i32) {
    %c0_i32 = arith.constant 0 : i32
    %c0_i32_0 = arith.constant 0 : i32
    %c0_i32_1 = arith.constant 0 : i32
    return %c0_i32, %c0_i32_0 : i32, i32
  }
  func.func @transform_3(%arg0: i32) -> (i32, i32) {
    %c0_i32 = arith.constant 0 : i32
    %c0_i32_0 = arith.constant 0 : i32
    %c0_i32_1 = arith.constant 0 : i32
    return %c0_i32, %c0_i32_0 : i32, i32
  }
  func.func @transform_4(%arg0: i32) -> (i32, i32) {
    %c0_i32 = arith.constant 0 : i32
    %c0_i32_0 = arith.constant 0 : i32
    %c0_i32_1 = arith.constant 0 : i32
    return %c0_i32, %c0_i32_0 : i32, i32
  }
  func.func @transform_5(%arg0: i32) -> (i32, i32) {
    %c0_i32 = arith.constant 0 : i32
    %c0_i32_0 = arith.constant 0 : i32
    %c0_i32_1 = arith.constant 0 : i32
    return %c0_i32, %c0_i32_0 : i32, i32
  }
  func.func @transform_6(%arg0: i32) -> (i32, i32) {
    %c0_i32 = arith.constant 0 : i32
    %c0_i32_0 = arith.constant 0 : i32
    %c0_i32_1 = arith.constant 0 : i32
    return %c0_i32, %c0_i32_0 : i32, i32
  }
  func.func @transform_7(%arg0: i32) -> (i32, i32) {
    %c0_i32 = arith.constant 0 : i32
    %c0_i32_0 = arith.constant 0 : i32
    %c0_i32_1 = arith.constant 0 : i32
    return %c0_i32, %c0_i32_0 : i32, i32
  }
  func.func @transform_8(%arg0: i32) -> (i32, i32) {
    %c0_i32 = arith.constant 0 : i32
    %c0_i32_0 = arith.constant 0 : i32
    %c0_i32_1 = arith.constant 0 : i32
    return %c0_i32, %c0_i32_0 : i32, i32
  }
  func.func @transform_9(%arg0: i32) -> (i32, i32) {
    %c0_i32 = arith.constant 0 : i32
    %c0_i32_0 = arith.constant 0 : i32
    return %arg0, %c0_i32 : i32, i32
  }
}

</mosaic_0001>

<llo_original>
// kernel: tpu_custom_call.1
$region0: #{tpu_custom_call.1}
  #allocation0 [shape = 'u32[]', space=smem, size = 0x4, offset = 0x4, fixed_abs, tag = 'smem constant byte address 0x4 - core index']
  #allocation1 [shape = 'u32[144,128]{1,0:T(1,128)}', space=vmem, size = 0x12000, scoped, tag = 'internal scratch']
  %s0 = inlined_call_operand.hbm [shape: f32[16,128], index: 0, kind: input, shape index: {}]
  %s1 = inlined_call_operand.hbm [shape: bf16[128,128], index: 1, kind: input, shape index: {}]
  %s2 = inlined_call_operand.vmem [shape: f32[1,128], index: 2, kind: input, shape index: {}]
  %s3 = inlined_call_operand.hbm [shape: bf16[128,512], index: 3, kind: input, shape index: {}]
  %s4 = inlined_call_operand.vmem [shape: f32[1,512], index: 4, kind: input, shape index: {}]
  %s5 = inlined_call_operand.hbm [shape: bf16[512,256], index: 5, kind: input, shape index: {}]
  %s6 = inlined_call_operand.vmem [shape: f32[1,256], index: 6, kind: input, shape index: {}]
  %s7 = inlined_call_operand.hbm [shape: bf16[256,128], index: 7, kind: input, shape index: {}]
  %s8 = inlined_call_operand.vmem [shape: f32[1,128], index: 8, kind: input, shape index: {}]
  %s9 = inlined_call_operand.hbm [shape: f32[16,128], index: 9, kind: output, shape index: {}]
  %s10 = sld [smem:[#allocation0]]
  $region66: #{tpu_custom_call.1} parent=0
    _
  %s12 = ssub.s32 1, %s10
  %s13 = scalar_select 0, %s12, %s10
  $region1: #{tpu_custom_call.1} parent=0
    #allocation2 [shape = 'u8[8192]{0}', space=vmem, size = 0x2000, scoped, tag = 'input window, operand 0, single buffered']
    #allocation3 [shape = 's32[1]{0}', space=sflag, size = 0x4, scoped, tag = 'scoped memory for tpu_custom_call.1']
    #allocation4 [shape = 's32[1]{0}', space=sflag, size = 0x4, scoped, tag = 'scoped memory for tpu_custom_call.1']
    #allocation5 [shape = 'u8[32768]{0}', space=vmem, size = 0x8000, scoped, tag = 'input window, operand 1, single buffered']
    #allocation6 [shape = 's32[1]{0}', space=sflag, size = 0x4, scoped, tag = 'scoped memory for tpu_custom_call.1']
    #allocation7 [shape = 'u8[131072]{0}', space=vmem, size = 0x20000, scoped, tag = 'input window, operand 3, single buffered']
    #allocation8 [shape = 'u8[262144]{0}', space=vmem, size = 0x40000, scoped, tag = 'input window, operand 5, single buffered']
    #allocation9 [shape = 's32[1]{0}', space=sflag, size = 0x4, scoped, tag = 'scoped memory for tpu_custom_call.1']
    #allocation10 [shape = 'u8[65536]{0}', space=vmem, size = 0x10000, scoped, tag = 'input window, operand 7, single buffered']
    #allocation11 [shape = 'u8[8192]{0}', space=vmem, size = 0x2000, scoped, tag = 'output window, operand 0, single buffered']
    %14 = vsyncpa [#allocation3], 0
    %15 = vsyncpa [#allocation6], 0
    %16 = vsyncpa [#allocation9], 0
    %17 = vsyncpa [#allocation4], 0
    // Predicated region
    $region2: #{tpu_custom_call.1} parent=1 // pred_check
      _
    $region3: #{tpu_custom_call.1} parent=1 // pred_check_branch
      %19 = sbr.rel (0) target = $region5
    $region4: #{tpu_custom_call.1} parent=1 // pred_region
      %s21 = ssub.s32 256, 256
      %22 = vsyncadd [#allocation3], %s21
      %s23 = sshll.u32 [#allocation2], 4
      %s24 = int_to_ptr.vmem [resolvable:$true] %s23
      %29 = dma.hbm_to_vmem [thread:$0]  %s0, 256, %s24, [#allocation3], 128, 128, 8
    $region5: #{tpu_custom_call.1} parent=1 // pred_fallthru
      _
    // Predicated region
    $region6: #{tpu_custom_call.1} parent=1 // pred_check
      _
    $region7: #{tpu_custom_call.1} parent=1 // pred_check_branch
      %31 = sbr.rel (0) target = $region9
    $region8: #{tpu_custom_call.1} parent=1 // pred_region
      %s33 = ssub.s32 1024, 1024
      %34 = vsyncadd [#allocation6], %s33
      %s35 = sshll.u32 [#allocation5], 4
      %s36 = int_to_ptr.vmem [resolvable:$true] %s35
      %41 = dma.hbm_to_vmem [thread:$0]  %s1, 1024, %s36, [#allocation6], 64, 64, 4
    $region9: #{tpu_custom_call.1} parent=1 // pred_fallthru
      _
    // Predicated region
    $region10: #{tpu_custom_call.1} parent=1 // pred_check
      _
    $region11: #{tpu_custom_call.1} parent=1 // pred_check_branch
      %43 = sbr.rel (0) target = $region13
    $region12: #{tpu_custom_call.1} parent=1 // pred_region
      _
    $region13: #{tpu_custom_call.1} parent=1 // pred_fallthru
      _
    // Predicated region
    $region14: #{tpu_custom_call.1} parent=1 // pred_check
      _
    $region15: #{tpu_custom_call.1} parent=1 // pred_check_branch
      %45 = sbr.rel (0) target = $region17
    $region16: #{tpu_custom_call.1} parent=1 // pred_region
      %s47 = ssub.s32 4096, 4096
      %48 = vsyncadd [#allocation6], %s47
      %s49 = sshll.u32 [#allocation7], 4
      %s50 = int_to_ptr.vmem [resolvable:$true] %s49
      %55 = dma.hbm_to_vmem [thread:$0]  %s3, 4096, %s50, [#allocation6], 256, 256, 16
    $region17: #{tpu_custom_call.1} parent=1 // pred_fallthru
      _
    // Predicated region
    $region18: #{tpu_custom_call.1} parent=1 // pred_check
      _
    $region19: #{tpu_custom_call.1} parent=1 // pred_check_branch
      %57 = sbr.rel (0) target = $region21
    $region20: #{tpu_custom_call.1} parent=1 // pred_region
      _
    $region21: #{tpu_custom_call.1} parent=1 // pred_fallthru
      _
    // Predicated region
    $region22: #{tpu_custom_call.1} parent=1 // pred_check
      _
    $region23: #{tpu_custom_call.1} parent=1 // pred_check_branch
      %59 = sbr.rel (0) target = $region25
    $region24: #{tpu_custom_call.1} parent=1 // pred_region
      %s61 = ssub.s32 8192, 8192
      %62 = vsyncadd [#allocation9], %s61
      %s63 = sshll.u32 [#allocation8], 4
      %s64 = int_to_ptr.vmem [resolvable:$true] %s63
      %69 = dma.hbm_to_vmem [thread:$0]  %s5, 8192, %s64, [#allocation9], 128, 128, 8
    $region25: #{tpu_custom_call.1} parent=1 // pred_fallthru
      _
    // Predicated region
    $region26: #{tpu_custom_call.1} parent=1 // pred_check
      _
    $region27: #{tpu_custom_call.1} parent=1 // pred_check_branch
      %71 = sbr.rel (0) target = $region29
    $region28: #{tpu_custom_call.1} parent=1 // pred_region
      _
    $region29: #{tpu_custom_call.1} parent=1 // pred_fallthru
      _
    // Predicated region
    $region30: #{tpu_custom_call.1} parent=1 // pred_check
      _
    $region31: #{tpu_custom_call.1} parent=1 // pred_check_branch
      %73 = sbr.rel (0) target = $region33
    $region32: #{tpu_custom_call.1} parent=1 // pred_region
      %s75 = ssub.s32 2048, 2048
      %76 = vsyncadd [#allocation9], %s75
      %s77 = sshll.u32 [#allocation10], 4
      %s78 = int_to_ptr.vmem [resolvable:$true] %s77
      %83 = dma.hbm_to_vmem [thread:$0]  %s7, 2048, %s78, [#allocation9], 64, 64, 4
    $region33: #{tpu_custom_call.1} parent=1 // pred_fallthru
      _
    // Predicated region
    $region34: #{tpu_custom_call.1} parent=1 // pred_check
      _
    $region35: #{tpu_custom_call.1} parent=1 // pred_check_branch
      %85 = sbr.rel (0) target = $region37
    $region36: #{tpu_custom_call.1} parent=1 // pred_region
      _
    $region37: #{tpu_custom_call.1} parent=1 // pred_fallthru
      _
    // Predicated region
    $region38: #{tpu_custom_call.1} parent=1 // pred_check
      _
    $region39: #{tpu_custom_call.1} parent=1 // pred_check_branch
      %87 = sbr.rel (0) target = $region41
    $region40: #{tpu_custom_call.1} parent=1 // pred_region
      %88 = dma.done [#allocation3], 256
    $region41: #{tpu_custom_call.1} parent=1 // pred_fallthru
      _
    // Predicated region
    $region42: #{tpu_custom_call.1} parent=1 // pred_check
      _
    $region43: #{tpu_custom_call.1} parent=1 // pred_check_branch
      %90 = sbr.rel (0) target = $region45
    $region44: #{tpu_custom_call.1} parent=1 // pred_region
      %91 = dma.done [#allocation6], 1024
    $region45: #{tpu_custom_call.1} parent=1 // pred_fallthru
      _
    // Predicated region
    $region46: #{tpu_custom_call.1} parent=1 // pred_check
      _
    $region47: #{tpu_custom_call.1} parent=1 // pred_check_branch
      %93 = sbr.rel (0) target = $region49
    $region48: #{tpu_custom_call.1} parent=1 // pred_region
      %94 = dma.done [#allocation6], 4096
    $region49: #{tpu_custom_call.1} parent=1 // pred_fallthru
      _
    // Predicated region
    $region50: #{tpu_custom_call.1} parent=1 // pred_check
      _
    $region51: #{tpu_custom_call.1} parent=1 // pred_check_branch
      %96 = sbr.rel (0) target = $region53
    $region52: #{tpu_custom_call.1} parent=1 // pred_region
      %97 = dma.done [#allocation9], 8192
    $region53: #{tpu_custom_call.1} parent=1 // pred_fallthru
      _
    // Predicated region
    $region54: #{tpu_custom_call.1} parent=1 // pred_check
      _
    $region55: #{tpu_custom_call.1} parent=1 // pred_check_branch
      %99 = sbr.rel (0) target = $region57
    $region56: #{tpu_custom_call.1} parent=1 // pred_region
      %100 = dma.done [#allocation9], 2048
    $region57: #{tpu_custom_call.1} parent=1 // pred_fallthru
      _
    %v102 = vld [vmem:[#allocation2] sm:$0xff]
    %v103 = vld [vmem:[#allocation2 + $0x8] sm:$0xff]
    %v104 = vpack.c.bf16 %v103, %v102
    %v105 = vld [vmem:[#allocation5] sm:$0xf]
    %v106 = vld [vmem:[#allocation5 + $0x4] sm:$0xf]
    %v107 = vld [vmem:[#allocation5 + $0x8] sm:$0xf]
    %v108 = vld [vmem:[#allocation5 + $0xc] sm:$0xf]
    %v109 = vld [vmem:[#allocation5 + $0x10] sm:$0xf]
    %v110 = vld [vmem:[#allocation5 + $0x14] sm:$0xf]
    %v111 = vld [vmem:[#allocation5 + $0x18] sm:$0xf]
    %v112 = vld [vmem:[#allocation5 + $0x1c] sm:$0xf]
    %v113 = vld [vmem:[#allocation5 + $0x20] sm:$0xf]
    %v114 = vld [vmem:[#allocation5 + $0x24] sm:$0xf]
    %v115 = vld [vmem:[#allocation5 + $0x28] sm:$0xf]
    %v116 = vld [vmem:[#allocation5 + $0x2c] sm:$0xf]
    %v117 = vld [vmem:[#allocation5 + $0x30] sm:$0xf]
    %v118 = vld [vmem:[#allocation5 + $0x34] sm:$0xf]
    %v119 = vld [vmem:[#allocation5 + $0x38] sm:$0xf]
    %v120 = vld [vmem:[#allocation5 + $0x3c] sm:$0xf]
    %v121 = vld [vmem:[%s2] sm:$0x1]
    %v123 = vlaneseq
    %v124 = vshrl.u32 %v123, 7
    %v125 = vsub.s32 0, %v124
    %v126 = vrot.slane %v121, %v125
    %v144 = vunpack.c.l.b16 %v105
    %v145 = vunpack.c.l.b16 %v106
    %v146 = vunpack.c.l.b16 %v107
    %v147 = vunpack.c.l.b16 %v108
    %v148 = vunpack.c.l.b16 %v109
    %v149 = vunpack.c.l.b16 %v110
    %v150 = vunpack.c.l.b16 %v111
    %v151 = vunpack.c.l.b16 %v112
    %v152 = vunpack.c.l.b16 %v113
    %v153 = vunpack.c.l.b16 %v114
    %v154 = vunpack.c.l.b16 %v115
    %v155 = vunpack.c.l.b16 %v116
    %v156 = vunpack.c.l.b16 %v117
    %v157 = vunpack.c.l.b16 %v118
    %v158 = vunpack.c.l.b16 %v119
    %v159 = vunpack.c.l.b16 %v120
    %v160 = vpack.c.b16 %v145, %v144
    %v161 = vpack.c.b16 %v147, %v146
    %v162 = vpack.c.b16 %v149, %v148
    %v163 = vpack.c.b16 %v151, %v150
    %v164 = vpack.c.b16 %v153, %v152
    %v165 = vpack.c.b16 %v155, %v154
    %v166 = vpack.c.b16 %v157, %v156
    %v167 = vpack.c.b16 %v159, %v158
    %176 = vmatprep.subr.bf16.mxu0 0
    %177 = vmatpush1.bf16.msra.mxu0 %v160
    %178 = vmatprep.subr.bf16.mxu0 0
    %179 = vmatpush1.bf16.msra.mxu0 %v161
    %180 = vmatprep.subr.bf16.mxu0 0
    %181 = vmatpush1.bf16.msra.mxu0 %v162
    %182 = vmatprep.subr.bf16.mxu0 0
    %183 = vmatpush1.bf16.msra.mxu0 %v163
    %184 = vmatprep.subr.bf16.mxu0 0
    %185 = vmatpush1.bf16.msra.mxu0 %v164
    %186 = vmatprep.subr.bf16.mxu0 0
    %187 = vmatpush1.bf16.msra.mxu0 %v165
    %188 = vmatprep.subr.bf16.mxu0 0
    %189 = vmatpush1.bf16.msra.mxu0 %v166
    %190 = vmatprep.subr.bf16.mxu0 0
    %191 = vmatpush1.bf16.msra.mxu0 %v167
    %192 = vmatprep.subr.bf16.mxu0 0
    %193 = vmatpush1.bf16.msra.mxu0 0
    %194 = vmatprep.subr.bf16.mxu0 0
    %195 = vmatpush1.bf16.msra.mxu0 0
    %196 = vmatprep.subr.bf16.mxu0 0
    %197 = vmatpush1.bf16.msra.mxu0 0
    %198 = vmatprep.subr.bf16.mxu0 0
    %199 = vmatpush1.bf16.msra.mxu0 0
    %200 = vmatprep.subr.bf16.mxu0 0
    %201 = vmatpush1.bf16.msra.mxu0 0
    %202 = vmatprep.subr.bf16.mxu0 0
    %203 = vmatpush1.bf16.msra.mxu0 0
    %204 = vmatprep.subr.bf16.mxu0 0
    %205 = vmatpush1.bf16.msra.mxu0 0
    %206 = vmatprep.subr.bf16.mxu0 0
    %207 = vmatpush1.bf16.msra.mxu0 0
    %208 = vmatprep.mubr.bf16.mxu0 0
    %209 = vmatmul.mubr.bf16.gmra.mrb[0].mxu0 %v104
    %v210 = vpop.f32.mrb[0].mxu0
    %v211 = vadd.f32 %v126, %v210
    %v212 = vpop.f32.mrb[0].mxu0
    %v213 = vpop.f32.mrb[0].mxu0
    %v214 = vadd.f32 %v126, %v213
    %v215 = vpop.f32.mrb[0].mxu0
    %216 = vdwg.mxu0
    %vm217 = vcmp.gt.f32.partialorder %v211, 0.0
    %vm218 = vcmp.gt.f32.partialorder %v214, 0.0
    %v219 = vmul.f32 %v211, 0.01
    %v220 = vmul.f32 %v214, 0.01
    %v221 = vsel %vm217, %v211, %v219
    %v222 = vsel %vm218, %v214, %v220
    %v223 = vpack.c.bf16 %v222, %v221
    %v224 = vld [vmem:[#allocation7] sm:$0xff]
    %v225 = vld [vmem:[#allocation7 + $0x8] sm:$0xff]
    %v226 = vld [vmem:[#allocation7 + $0x10] sm:$0xff]
    %v227 = vld [vmem:[#allocation7 + $0x18] sm:$0xff]
    %v228 = vld [vmem:[#allocation7 + $0x20] sm:$0xff]
    %v229 = vld [vmem:[#allocation7 + $0x28] sm:$0xff]
    %v230 = vld [vmem:[#allocation7 + $0x30] sm:$0xff]
    %v231 = vld [vmem:[#allocation7 + $0x38] sm:$0xff]
    %v232 = vld [vmem:[#allocation7 + $0x40] sm:$0xff]
    %v233 = vld [vmem:[#allocation7 + $0x48] sm:$0xff]
    %v234 = vld [vmem:[#allocation7 + $0x50] sm:$0xff]
    %v235 = vld [vmem:[#allocation7 + $0x58] sm:$0xff]
    %v236 = vld [vmem:[#allocation7 + $0x60] sm:$0xff]
    %v237 = vld [vmem:[#allocation7 + $0x68] sm:$0xff]
    %v238 = vld [vmem:[#allocation7 + $0x70] sm:$0xff]
    %v239 = vld [vmem:[#allocation7 + $0x78] sm:$0xff]
    %v240 = vld [vmem:[#allocation7 + $0x80] sm:$0xff]
    %v241 = vld [vmem:[#allocation7 + $0x88] sm:$0xff]
    %v242 = vld [vmem:[#allocation7 + $0x90] sm:$0xff]
    %v243 = vld [vmem:[#allocation7 + $0x98] sm:$0xff]
    %v244 = vld [vmem:[#allocation7 + $0xa0] sm:$0xff]
    %v245 = vld [vmem:[#allocation7 + $0xa8] sm:$0xff]
    %v246 = vld [vmem:[#allocation7 + $0xb0] sm:$0xff]
    %v247 = vld [vmem:[#allocation7 + $0xb8] sm:$0xff]
    %v248 = vld [vmem:[#allocation7 + $0xc0] sm:$0xff]
    %v249 = vld [vmem:[#allocation7 + $0xc8] sm:$0xff]
    %v250 = vld [vmem:[#allocation7 + $0xd0] sm:$0xff]
    %v251 = vld [vmem:[#allocation7 + $0xd8] sm:$0xff]
    %v252 = vld [vmem:[#allocation7 + $0xe0] sm:$0xff]
    %v253 = vld [vmem:[#allocation7 + $0xe8] sm:$0xff]
    %v254 = vld [vmem:[#allocation7 + $0xf0] sm:$0xff]
    %v255 = vld [vmem:[#allocation7 + $0xf8] sm:$0xff]
    %v256 = vld [vmem:[%s4] sm:$0xf]
    %v258 = vlaneseq
    %v259 = vshrl.u32 %v258, 7
    %v260 = vsub.s32 0, %v259
    %v261 = vrot.slane %v256, %v260
    %v262 = vlaneseq
    %v263 = vshrl.u32 %v262, 7
    %v264 = vsub.s32 1, %v263
    %v265 = vrot.slane %v256, %v264
    %v266 = vlaneseq
    %v267 = vshrl.u32 %v266, 7
    %v268 = vsub.s32 2, %v267
    %v269 = vrot.slane %v256, %v268
    %v270 = vlaneseq
    %v271 = vshrl.u32 %v270, 7
    %v272 = vsub.s32 3, %v271
    %v273 = vrot.slane %v256, %v272
    %v310 = vunpack.c.l.b16 %v224
    %v311 = vunpack.c.h.b16 %v224
    %v312 = vunpack.c.l.b16 %v225
    %v313 = vunpack.c.h.b16 %v225
    %v314 = vunpack.c.l.b16 %v226
    %v315 = vunpack.c.h.b16 %v226
    %v316 = vunpack.c.l.b16 %v227
    %v317 = vunpack.c.h.b16 %v227
    %v318 = vunpack.c.l.b16 %v228
    %v319 = vunpack.c.h.b16 %v228
    %v320 = vunpack.c.l.b16 %v229
    %v321 = vunpack.c.h.b16 %v229
    %v322 = vunpack.c.l.b16 %v230
    %v323 = vunpack.c.h.b16 %v230
    %v324 = vunpack.c.l.b16 %v231
    %v325 = vunpack.c.h.b16 %v231
    %v326 = vunpack.c.l.b16 %v232
    %v327 = vunpack.c.h.b16 %v232
    %v328 = vunpack.c.l.b16 %v233
    %v329 = vunpack.c.h.b16 %v233
    %v330 = vunpack.c.l.b16 %v234
    %v331 = vunpack.c.h.b16 %v234
    %v332 = vunpack.c.l.b16 %v235
    %v333 = vunpack.c.h.b16 %v235
    %v334 = vunpack.c.l.b16 %v236
    %v335 = vunpack.c.h.b16 %v236
    %v336 = vunpack.c.l.b16 %v237
    %v337 = vunpack.c.h.b16 %v237
    %v338 = vunpack.c.l.b16 %v238
    %v339 = vunpack.c.h.b16 %v238
    %v340 = vunpack.c.l.b16 %v239
    %v341 = vunpack.c.h.b16 %v239
    %v342 = vunpack.c.l.b16 %v240
    %v343 = vunpack.c.h.b16 %v240
    %v344 = vunpack.c.l.b16 %v241
    %v345 = vunpack.c.h.b16 %v241
    %v346 = vunpack.c.l.b16 %v242
    %v347 = vunpack.c.h.b16 %v242
    %v348 = vunpack.c.l.b16 %v243
    %v349 = vunpack.c.h.b16 %v243
    %v350 = vunpack.c.l.b16 %v244
    %v351 = vunpack.c.h.b16 %v244
    %v352 = vunpack.c.l.b16 %v245
    %v353 = vunpack.c.h.b16 %v245
    %v354 = vunpack.c.l.b16 %v246
    %v355 = vunpack.c.h.b16 %v246
    %v356 = vunpack.c.l.b16 %v247
    %v357 = vunpack.c.h.b16 %v247
    %v358 = vunpack.c.l.b16 %v248
    %v359 = vunpack.c.h.b16 %v248
    %v360 = vunpack.c.l.b16 %v249
    %v361 = vunpack.c.h.b16 %v249
    %v362 = vunpack.c.l.b16 %v250
    %v363 = vunpack.c.h.b16 %v250
    %v364 = vunpack.c.l.b16 %v251
    %v365 = vunpack.c.h.b16 %v251
    %v366 = vunpack.c.l.b16 %v252
    %v367 = vunpack.c.h.b16 %v252
    %v368 = vunpack.c.l.b16 %v253
    %v369 = vunpack.c.h.b16 %v253
    %v370 = vunpack.c.l.b16 %v254
    %v371 = vunpack.c.h.b16 %v254
    %v372 = vunpack.c.l.b16 %v255
    %v373 = vunpack.c.h.b16 %v255
    %v374 = vpack.c.b16 %v314, %v310
    %v375 = vpack.c.b16 %v315, %v311
    %v376 = vpack.c.b16 %v316, %v312
    %v377 = vpack.c.b16 %v317, %v313
    %v378 = vpack.c.b16 %v322, %v318
    %v379 = vpack.c.b16 %v323, %v319
    %v380 = vpack.c.b16 %v324, %v320
    %v381 = vpack.c.b16 %v325, %v321
    %v382 = vpack.c.b16 %v330, %v326
    %v383 = vpack.c.b16 %v331, %v327
    %v384 = vpack.c.b16 %v332, %v328
    %v385 = vpack.c.b16 %v333, %v329
    %v386 = vpack.c.b16 %v338, %v334
    %v387 = vpack.c.b16 %v339, %v335
    %v388 = vpack.c.b16 %v340, %v336
    %v389 = vpack.c.b16 %v341, %v337
    %v390 = vpack.c.b16 %v346, %v342
    %v391 = vpack.c.b16 %v347, %v343
    %v392 = vpack.c.b16 %v348, %v344
    %v393 = vpack.c.b16 %v349, %v345
    %v394 = vpack.c.b16 %v354, %v350
    %v395 = vpack.c.b16 %v355, %v351
    %v396 = vpack.c.b16 %v356, %v352
    %v397 = vpack.c.b16 %v357, %v353
    %v398 = vpack.c.b16 %v362, %v358
    %v399 = vpack.c.b16 %v363, %v359
    %v400 = vpack.c.b16 %v364, %v360
    %v401 = vpack.c.b16 %v365, %v361
    %v402 = vpack.c.b16 %v370, %v366
    %v403 = vpack.c.b16 %v371, %v367
    %v404 = vpack.c.b16 %v372, %v368
    %v405 = vpack.c.b16 %v373, %v369
    %438 = vmatprep.subr.bf16.mxu0 %v375
    %439 = vmatpush1.bf16.msra.mxu0 %v374
    %440 = vmatprep.subr.bf16.mxu0 %v379
    %441 = vmatpush1.bf16.msra.mxu0 %v378
    %442 = vmatprep.subr.bf16.mxu0 %v383
    %443 = vmatpush1.bf16.msra.mxu0 %v382
    %444 = vmatprep.subr.bf16.mxu0 %v387
    %445 = vmatpush1.bf16.msra.mxu0 %v386
    %446 = vmatprep.subr.bf16.mxu0 %v391
    %447 = vmatpush1.bf16.msra.mxu0 %v390
    %448 = vmatprep.subr.bf16.mxu0 %v395
    %449 = vmatpush1.bf16.msra.mxu0 %v394
    %450 = vmatprep.subr.bf16.mxu0 %v399
    %451 = vmatpush1.bf16.msra.mxu0 %v398
    %452 = vmatprep.subr.bf16.mxu0 %v403
    %453 = vmatpush1.bf16.msra.mxu0 %v402
    %454 = vmatprep.subr.bf16.mxu0 0
    %455 = vmatpush1.bf16.msra.mxu0 0
    %456 = vmatprep.subr.bf16.mxu0 0
    %457 = vmatpush1.bf16.msra.mxu0 0
    %458 = vmatprep.subr.bf16.mxu0 0
    %459 = vmatpush1.bf16.msra.mxu0 0
    %460 = vmatprep.subr.bf16.mxu0 0
    %461 = vmatpush1.bf16.msra.mxu0 0
    %462 = vmatprep.subr.bf16.mxu0 0
    %463 = vmatpush1.bf16.msra.mxu0 0
    %464 = vmatprep.subr.bf16.mxu0 0
    %465 = vmatpush1.bf16.msra.mxu0 0
    %466 = vmatprep.subr.bf16.mxu0 0
    %467 = vmatpush1.bf16.msra.mxu0 0
    %468 = vmatprep.subr.bf16.mxu0 0
    %469 = vmatpush1.bf16.msra.mxu0 0
    %470 = vmatprep.mubr.bf16.mxu0 0
    %471 = vmatmul.mubr.bf16.gmra.mrb[0].mxu0 %v223
    %v472 = vpop.f32.mrb[0].mxu0
    %v473 = vadd.f32 %v261, %v472
    %v474 = vpop.f32.mrb[0].mxu0
    %v475 = vadd.f32 %v265, %v474
    %v476 = vpop.f32.mrb[0].mxu0
    %v477 = vadd.f32 %v261, %v476
    %v478 = vpop.f32.mrb[0].mxu0
    %v479 = vadd.f32 %v265, %v478
    %480 = vdwg.mxu0
    %481 = vmatprep.subr.bf16.mxu0 %v377
    %482 = vmatpush1.bf16.msra.mxu0 %v376
    %483 = vmatprep.subr.bf16.mxu0 %v381
    %484 = vmatpush1.bf16.msra.mxu0 %v380
    %485 = vmatprep.subr.bf16.mxu0 %v385
    %486 = vmatpush1.bf16.msra.mxu0 %v384
    %487 = vmatprep.subr.bf16.mxu0 %v389
    %488 = vmatpush1.bf16.msra.mxu0 %v388
    %489 = vmatprep.subr.bf16.mxu0 %v393
    %490 = vmatpush1.bf16.msra.mxu0 %v392
    %491 = vmatprep.subr.bf16.mxu0 %v397
    %492 = vmatpush1.bf16.msra.mxu0 %v396
    %493 = vmatprep.subr.bf16.mxu0 %v401
    %494 = vmatpush1.bf16.msra.mxu0 %v400
    %495 = vmatprep.subr.bf16.mxu0 %v405
    %496 = vmatpush1.bf16.msra.mxu0 %v404
    %497 = vmatprep.subr.bf16.mxu0 0
    %498 = vmatpush1.bf16.msra.mxu0 0
    %499 = vmatprep.subr.bf16.mxu0 0
    %500 = vmatpush1.bf16.msra.mxu0 0
    %501 = vmatprep.subr.bf16.mxu0 0
    %502 = vmatpush1.bf16.msra.mxu0 0
    %503 = vmatprep.subr.bf16.mxu0 0
    %504 = vmatpush1.bf16.msra.mxu0 0
    %505 = vmatprep.subr.bf16.mxu0 0
    %506 = vmatpush1.bf16.msra.mxu0 0
    %507 = vmatprep.subr.bf16.mxu0 0
    %508 = vmatpush1.bf16.msra.mxu0 0
    %509 = vmatprep.subr.bf16.mxu0 0
    %510 = vmatpush1.bf16.msra.mxu0 0
    %511 = vmatprep.subr.bf16.mxu0 0
    %512 = vmatpush1.bf16.msra.mxu0 0
    %513 = vmatprep.mubr.bf16.mxu0 0
    %514 = vmatmul.mubr.bf16.gmra.mrb[0].mxu0 %v223
    %v515 = vpop.f32.mrb[0].mxu0
    %v516 = vadd.f32 %v269, %v515
    %v517 = vpop.f32.mrb[0].mxu0
    %v518 = vadd.f32 %v273, %v517
    %v519 = vpop.f32.mrb[0].mxu0
    %v520 = vadd.f32 %v269, %v519
    %v521 = vpop.f32.mrb[0].mxu0
    %v522 = vadd.f32 %v273, %v521
    %523 = vdwg.mxu0
    %vm524 = vcmp.gt.f32.partialorder %v473, 0.0
    %vm525 = vcmp.gt.f32.partialorder %v475, 0.0
    %vm526 = vcmp.gt.f32.partialorder %v516, 0.0
    %vm527 = vcmp.gt.f32.partialorder %v518, 0.0
    %vm528 = vcmp.gt.f32.partialorder %v477, 0.0
    %vm529 = vcmp.gt.f32.partialorder %v479, 0.0
    %vm530 = vcmp.gt.f32.partialorder %v520, 0.0
    %vm531 = vcmp.gt.f32.partialorder %v522, 0.0
    %v532 = vmul.f32 %v473, 0.01
    %v533 = vmul.f32 %v475, 0.01
    %v534 = vmul.f32 %v516, 0.01
    %v535 = vmul.f32 %v518, 0.01
    %v536 = vmul.f32 %v477, 0.01
    %v537 = vmul.f32 %v479, 0.01
    %v538 = vmul.f32 %v520, 0.01
    %v539 = vmul.f32 %v522, 0.01
    %v540 = vsel %vm524, %v473, %v532
    %v541 = vsel %vm525, %v475, %v533
    %v542 = vsel %vm526, %v516, %v534
    %v543 = vsel %vm527, %v518, %v535
    %v544 = vsel %vm528, %v477, %v536
    %v545 = vsel %vm529, %v479, %v537
    %v546 = vsel %vm530, %v520, %v538
    %v547 = vsel %vm531, %v522, %v539
    %v548 = vpack.c.bf16 %v544, %v540
    %v549 = vpack.c.bf16 %v545, %v541
    %v550 = vpack.c.bf16 %v546, %v542
    %v551 = vpack.c.bf16 %v547, %v543
    %v552 = vld [vmem:[#allocation8] sm:$0xff]
    %v553 = vld [vmem:[#allocation8 + $0x8] sm:$0xff]
    %v554 = vld [vmem:[#allocation8 + $0x10] sm:$0xff]
    %v555 = vld [vmem:[#allocation8 + $0x18] sm:$0xff]
    %v556 = vld [vmem:[#allocation8 + $0x20] sm:$0xff]
    %v557 = vld [vmem:[#allocation8 + $0x28] sm:$0xff]
    %v558 = vld [vmem:[#allocation8 + $0x30] sm:$0xff]
    %v559 = vld [vmem:[#allocation8 + $0x38] sm:$0xff]
    %v560 = vld [vmem:[#allocation8 + $0x40] sm:$0xff]
    %v561 = vld [vmem:[#allocation8 + $0x48] sm:$0xff]
    %v562 = vld [vmem:[#allocation8 + $0x50] sm:$0xff]
    %v563 = vld [vmem:[#allocation8 + $0x58] sm:$0xff]
    %v564 = vld [vmem:[#allocation8 + $0x60] sm:$0xff]
    %v565 = vld [vmem:[#allocation8 + $0x68] sm:$0xff]
    %v566 = vld [vmem:[#allocation8 + $0x70] sm:$0xff]
    %v567 = vld [vmem:[#allocation8 + $0x78] sm:$0xff]
    %v568 = vld [vmem:[#allocation8 + $0x80] sm:$0xff]
    %v569 = vld [vmem:[#allocation8 + $0x88] sm:$0xff]
    %v570 = vld [vmem:[#allocation8 + $0x90] sm:$0xff]
    %v571 = vld [vmem:[#allocation8 + $0x98] sm:$0xff]
    %v572 = vld [vmem:[#allocation8 + $0xa0] sm:$0xff]
    %v573 = vld [vmem:[#allocation8 + $0xa8] sm:$0xff]
    %v574 = vld [vmem:[#allocation8 + $0xb0] sm:$0xff]
    %v575 = vld [vmem:[#allocation8 + $0xb8] sm:$0xff]
    %v576 = vld [vmem:[#allocation8 + $0xc0] sm:$0xff]
    %v577 = vld [vmem:[#allocation8 + $0xc8] sm:$0xff]
    %v578 = vld [vmem:[#allocation8 + $0xd0] sm:$0xff]
    %v579 = vld [vmem:[#allocation8 + $0xd8] sm:$0xff]
    %v580 = vld [vmem:[#allocation8 + $0xe0] sm:$0xff]
    %v581 = vld [vmem:[#allocation8 + $0xe8] sm:$0xff]
    %v582 = vld [vmem:[#allocation8 + $0xf0] sm:$0xff]
    %v583 = vld [vmem:[#allocation8 + $0xf8] sm:$0xff]
    %v584 = vld [vmem:[#allocation8 + $0x100] sm:$0xff]
    %v585 = vld [vmem:[#allocation8 + $0x108] sm:$0xff]
    %v586 = vld [vmem:[#allocation8 + $0x110] sm:$0xff]
    %v587 = vld [vmem:[#allocation8 + $0x118] sm:$0xff]
    %v588 = vld [vmem:[#allocation8 + $0x120] sm:$0xff]
    %v589 = vld [vmem:[#allocation8 + $0x128] sm:$0xff]
    %v590 = vld [vmem:[#allocation8 + $0x130] sm:$0xff]
    %v591 = vld [vmem:[#allocation8 + $0x138] sm:$0xff]
    %v592 = vld [vmem:[#allocation8 + $0x140] sm:$0xff]
    %v593 = vld [vmem:[#allocation8 + $0x148] sm:$0xff]
    %v594 = vld [vmem:[#allocation8 + $0x150] sm:$0xff]
    %v595 = vld [vmem:[#allocation8 + $0x158] sm:$0xff]
    %v596 = vld [vmem:[#allocation8 + $0x160] sm:$0xff]
    %v597 = vld [vmem:[#allocation8 + $0x168] sm:$0xff]
    %v598 = vld [vmem:[#allocation8 + $0x170] sm:$0xff]
    %v599 = vld [vmem:[#allocation8 + $0x178] sm:$0xff]
    %v600 = vld [vmem:[#allocation8 + $0x180] sm:$0xff]
    %v601 = vld [vmem:[#allocation8 + $0x188] sm:$0xff]
    %v602 = vld [vmem:[#allocation8 + $0x190] sm:$0xff]
    %v603 = vld [vmem:[#allocation8 + $0x198] sm:$0xff]
    %v604 = vld [vmem:[#allocation8 + $0x1a0] sm:$0xff]
    %v605 = vld [vmem:[#allocation8 + $0x1a8] sm:$0xff]
    %v606 = vld [vmem:[#allocation8 + $0x1b0] sm:$0xff]
    %v607 = vld [vmem:[#allocation8 + $0x1b8] sm:$0xff]
    %v608 = vld [vmem:[#allocation8 + $0x1c0] sm:$0xff]
    %v609 = vld [vmem:[#allocation8 + $0x1c8] sm:$0xff]
    %v610 = vld [vmem:[#allocation8 + $0x1d0] sm:$0xff]
    %v611 = vld [vmem:[#allocation8 + $0x1d8] sm:$0xff]
    %v612 = vld [vmem:[#allocation8 + $0x1e0] sm:$0xff]
    %v613 = vld [vmem:[#allocation8 + $0x1e8] sm:$0xff]
    %v614 = vld [vmem:[#allocation8 + $0x1f0] sm:$0xff]
    %v615 = vld [vmem:[#allocation8 + $0x1f8] sm:$0xff]
    %v616 = vld [vmem:[%s6] sm:$0x3]
    %v618 = vlaneseq
    %v619 = vshrl.u32 %v618, 7
    %v620 = vsub.s32 0, %v619
    %v621 = vrot.slane %v616, %v620
    %v622 = vlaneseq
    %v623 = vshrl.u32 %v622, 7
    %v624 = vsub.s32 1, %v623
    %v625 = vrot.slane %v616, %v624
    %v692 = vunpack.c.l.b16 %v552
    %v693 = vunpack.c.h.b16 %v552
    %v694 = vunpack.c.l.b16 %v553
    %v695 = vunpack.c.h.b16 %v553
    %v696 = vunpack.c.l.b16 %v554
    %v697 = vunpack.c.h.b16 %v554
    %v698 = vunpack.c.l.b16 %v555
    %v699 = vunpack.c.h.b16 %v555
    %v700 = vunpack.c.l.b16 %v556
    %v701 = vunpack.c.h.b16 %v556
    %v702 = vunpack.c.l.b16 %v557
    %v703 = vunpack.c.h.b16 %v557
    %v704 = vunpack.c.l.b16 %v558
    %v705 = vunpack.c.h.b16 %v558
    %v706 = vunpack.c.l.b16 %v559
    %v707 = vunpack.c.h.b16 %v559
    %v708 = vunpack.c.l.b16 %v560
    %v709 = vunpack.c.h.b16 %v560
    %v710 = vunpack.c.l.b16 %v561
    %v711 = vunpack.c.h.b16 %v561
    %v712 = vunpack.c.l.b16 %v562
    %v713 = vunpack.c.h.b16 %v562
    %v714 = vunpack.c.l.b16 %v563
    %v715 = vunpack.c.h.b16 %v563
    %v716 = vunpack.c.l.b16 %v564
    %v717 = vunpack.c.h.b16 %v564
    %v718 = vunpack.c.l.b16 %v565
    %v719 = vunpack.c.h.b16 %v565
    %v720 = vunpack.c.l.b16 %v566
    %v721 = vunpack.c.h.b16 %v566
    %v722 = vunpack.c.l.b16 %v567
    %v723 = vunpack.c.h.b16 %v567
    %v724 = vunpack.c.l.b16 %v568
    %v725 = vunpack.c.h.b16 %v568
    %v726 = vunpack.c.l.b16 %v569
    %v727 = vunpack.c.h.b16 %v569
    %v728 = vunpack.c.l.b16 %v570
    %v729 = vunpack.c.h.b16 %v570
    %v730 = vunpack.c.l.b16 %v571
    %v731 = vunpack.c.h.b16 %v571
    %v732 = vunpack.c.l.b16 %v572
    %v733 = vunpack.c.h.b16 %v572
    %v734 = vunpack.c.l.b16 %v573
    %v735 = vunpack.c.h.b16 %v573
    %v736 = vunpack.c.l.b16 %v574
    %v737 = vunpack.c.h.b16 %v574
    %v738 = vunpack.c.l.b16 %v575
    %v739 = vunpack.c.h.b16 %v575
    %v740 = vunpack.c.l.b16 %v576
    %v741 = vunpack.c.h.b16 %v576
    %v742 = vunpack.c.l.b16 %v577
    %v743 = vunpack.c.h.b16 %v577
    %v744 = vunpack.c.l.b16 %v578
    %v745 = vunpack.c.h.b16 %v578
    %v746 = vunpack.c.l.b16 %v579
    %v747 = vunpack.c.h.b16 %v579
    %v748 = vunpack.c.l.b16 %v580
    %v749 = vunpack.c.h.b16 %v580
    %v750 = vunpack.c.l.b16 %v581
    %v751 = vunpack.c.h.b16 %v581
    %v752 = vunpack.c.l.b16 %v582
    %v753 = vunpack.c.h.b16 %v582
    %v754 = vunpack.c.l.b16 %v583
    %v755 = vunpack.c.h.b16 %v583
    %v756 = vunpack.c.l.b16 %v584
    %v757 = vunpack.c.h.b16 %v584
    %v758 = vunpack.c.l.b16 %v585
    %v759 = vunpack.c.h.b16 %v585
    %v760 = vunpack.c.l.b16 %v586
    %v761 = vunpack.c.h.b16 %v586
    %v762 = vunpack.c.l.b16 %v587
    %v763 = vunpack.c.h.b16 %v587
    %v764 = vunpack.c.l.b16 %v588
    %v765 = vunpack.c.h.b16 %v588
    %v766 = vunpack.c.l.b16 %v589
    %v767 = vunpack.c.h.b16 %v589
    %v768 = vunpack.c.l.b16 %v590
    %v769 = vunpack.c.h.b16 %v590
    %v770 = vunpack.c.l.b16 %v591
    %v771 = vunpack.c.h.b16 %v591
    %v772 = vunpack.c.l.b16 %v592
    %v773 = vunpack.c.h.b16 %v592
    %v774 = vunpack.c.l.b16 %v593
    %v775 = vunpack.c.h.b16 %v593
    %v776 = vunpack.c.l.b16 %v594
    %v777 = vunpack.c.h.b16 %v594
    %v778 = vunpack.c.l.b16 %v595
    %v779 = vunpack.c.h.b16 %v595
    %v780 = vunpack.c.l.b16 %v596
    %v781 = vunpack.c.h.b16 %v596
    %v782 = vunpack.c.l.b16 %v597
    %v783 = vunpack.c.h.b16 %v597
    %v784 = vunpack.c.l.b16 %v598
    %v785 = vunpack.c.h.b16 %v598
    %v786 = vunpack.c.l.b16 %v599
    %v787 = vunpack.c.h.b16 %v599
    %v788 = vunpack.c.l.b16 %v600
    %v789 = vunpack.c.h.b16 %v600
    %v790 = vunpack.c.l.b16 %v601
    %v791 = vunpack.c.h.b16 %v601
    %v792 = vunpack.c.l.b16 %v602
    %v793 = vunpack.c.h.b16 %v602
    %v794 = vunpack.c.l.b16 %v603
    %v795 = vunpack.c.h.b16 %v603
    %v796 = vunpack.c.l.b16 %v604
    %v797 = vunpack.c.h.b16 %v604
    %v798 = vunpack.c.l.b16 %v605
    %v799 = vunpack.c.h.b16 %v605
    %v800 = vunpack.c.l.b16 %v606
    %v801 = vunpack.c.h.b16 %v606
    %v802 = vunpack.c.l.b16 %v607
    %v803 = vunpack.c.h.b16 %v607
    %v804 = vunpack.c.l.b16 %v608
    %v805 = vunpack.c.h.b16 %v608
    %v806 = vunpack.c.l.b16 %v609
    %v807 = vunpack.c.h.b16 %v609
    %v808 = vunpack.c.l.b16 %v610
    %v809 = vunpack.c.h.b16 %v610
    %v810 = vunpack.c.l.b16 %v611
    %v811 = vunpack.c.h.b16 %v611
    %v812 = vunpack.c.l.b16 %v612
    %v813 = vunpack.c.h.b16 %v612
    %v814 = vunpack.c.l.b16 %v613
    %v815 = vunpack.c.h.b16 %v613
    %v816 = vunpack.c.l.b16 %v614
    %v817 = vunpack.c.h.b16 %v614
    %v818 = vunpack.c.l.b16 %v615
    %v819 = vunpack.c.h.b16 %v615
    %v820 = vpack.c.b16 %v694, %v692
    %v821 = vpack.c.b16 %v695, %v693
    %v822 = vpack.c.b16 %v698, %v696
    %v823 = vpack.c.b16 %v699, %v697
    %v824 = vpack.c.b16 %v702, %v700
    %v825 = vpack.c.b16 %v703, %v701
    %v826 = vpack.c.b16 %v706, %v704
    %v827 = vpack.c.b16 %v707, %v705
    %v828 = vpack.c.b16 %v710, %v708
    %v829 = vpack.c.b16 %v711, %v709
    %v830 = vpack.c.b16 %v714, %v712
    %v831 = vpack.c.b16 %v715, %v713
    %v832 = vpack.c.b16 %v718, %v716
    %v833 = vpack.c.b16 %v719, %v717
    %v834 = vpack.c.b16 %v722, %v720
    %v835 = vpack.c.b16 %v723, %v721
    %v836 = vpack.c.b16 %v726, %v724
    %v837 = vpack.c.b16 %v727, %v725
    %v838 = vpack.c.b16 %v730, %v728
    %v839 = vpack.c.b16 %v731, %v729
    %v840 = vpack.c.b16 %v734, %v732
    %v841 = vpack.c.b16 %v735, %v733
    %v842 = vpack.c.b16 %v738, %v736
    %v843 = vpack.c.b16 %v739, %v737
    %v844 = vpack.c.b16 %v742, %v740
    %v845 = vpack.c.b16 %v743, %v741
    %v846 = vpack.c.b16 %v746, %v744
    %v847 = vpack.c.b16 %v747, %v745
    %v848 = vpack.c.b16 %v750, %v748
    %v849 = vpack.c.b16 %v751, %v749
    %v850 = vpack.c.b16 %v754, %v752
    %v851 = vpack.c.b16 %v755, %v753
    %v852 = vpack.c.b16 %v758, %v756
    %v853 = vpack.c.b16 %v759, %v757
    %v854 = vpack.c.b16 %v762, %v760
    %v855 = vpack.c.b16 %v763, %v761
    %v856 = vpack.c.b16 %v766, %v764
    %v857 = vpack.c.b16 %v767, %v765
    %v858 = vpack.c.b16 %v770, %v768
    %v859 = vpack.c.b16 %v771, %v769
    %v860 = vpack.c.b16 %v774, %v772
    %v861 = vpack.c.b16 %v775, %v773
    %v862 = vpack.c.b16 %v778, %v776
    %v863 = vpack.c.b16 %v779, %v777
    %v864 = vpack.c.b16 %v782, %v780
    %v865 = vpack.c.b16 %v783, %v781
    %v866 = vpack.c.b16 %v786, %v784
    %v867 = vpack.c.b16 %v787, %v785
    %v868 = vpack.c.b16 %v790, %v788
    %v869 = vpack.c.b16 %v791, %v789
    %v870 = vpack.c.b16 %v794, %v792
    %v871 = vpack.c.b16 %v795, %v793
    %v872 = vpack.c.b16 %v798, %v796
    %v873 = vpack.c.b16 %v799, %v797
    %v874 = vpack.c.b16 %v802, %v800
    %v875 = vpack.c.b16 %v803, %v801
    %v876 = vpack.c.b16 %v806, %v804
    %v877 = vpack.c.b16 %v807, %v805
    %v878 = vpack.c.b16 %v810, %v808
    %v879 = vpack.c.b16 %v811, %v809
    %v880 = vpack.c.b16 %v814, %v812
    %v881 = vpack.c.b16 %v815, %v813
    %v882 = vpack.c.b16 %v818, %v816
    %v883 = vpack.c.b16 %v819, %v817
    %948 = vmatprep.subr.bf16.mxu0 %v821
    %949 = vmatpush1.bf16.msra.mxu0 %v820
    %950 = vmatprep.subr.bf16.mxu0 %v823
    %951 = vmatpush1.bf16.msra.mxu0 %v822
    %952 = vmatprep.subr.bf16.mxu0 %v825
    %953 = vmatpush1.bf16.msra.mxu0 %v824
    %954 = vmatprep.subr.bf16.mxu0 %v827
    %955 = vmatpush1.bf16.msra.mxu0 %v826
    %956 = vmatprep.subr.bf16.mxu0 %v829
    %957 = vmatpush1.bf16.msra.mxu0 %v828
    %958 = vmatprep.subr.bf16.mxu0 %v831
    %959 = vmatpush1.bf16.msra.mxu0 %v830
    %960 = vmatprep.subr.bf16.mxu0 %v833
    %961 = vmatpush1.bf16.msra.mxu0 %v832
    %962 = vmatprep.subr.bf16.mxu0 %v835
    %963 = vmatpush1.bf16.msra.mxu0 %v834
    %964 = vmatprep.subr.bf16.mxu0 %v837
    %965 = vmatpush1.bf16.msra.mxu0 %v836
    %966 = vmatprep.subr.bf16.mxu0 %v839
    %967 = vmatpush1.bf16.msra.mxu0 %v838
    %968 = vmatprep.subr.bf16.mxu0 %v841
    %969 = vmatpush1.bf16.msra.mxu0 %v840
    %970 = vmatprep.subr.bf16.mxu0 %v843
    %971 = vmatpush1.bf16.msra.mxu0 %v842
    %972 = vmatprep.subr.bf16.mxu0 %v845
    %973 = vmatpush1.bf16.msra.mxu0 %v844
    %974 = vmatprep.subr.bf16.mxu0 %v847
    %975 = vmatpush1.bf16.msra.mxu0 %v846
    %976 = vmatprep.subr.bf16.mxu0 %v849
    %977 = vmatpush1.bf16.msra.mxu0 %v848
    %978 = vmatprep.subr.bf16.mxu0 %v851
    %979 = vmatpush1.bf16.msra.mxu0 %v850
    %980 = vmatprep.mubr.bf16.mxu0 %v549
    %981 = vmatmul.mubr.bf16.gmra.mrb[0].mxu0 %v548
    %v982 = vpop.f32.mrb[0].mxu0
    %v983 = vadd.f32 %v621, %v982
    %v984 = vpop.f32.mrb[0].mxu0
    %v985 = vadd.f32 %v625, %v984
    %v986 = vpop.f32.mrb[0].mxu0
    %v987 = vadd.f32 %v621, %v986
    %v988 = vpop.f32.mrb[0].mxu0
    %v989 = vadd.f32 %v625, %v988
    %990 = vdwg.mxu0
    %991 = vmatprep.subr.bf16.mxu0 %v853
    %992 = vmatpush1.bf16.msra.mxu0 %v852
    %993 = vmatprep.subr.bf16.mxu0 %v855
    %994 = vmatpush1.bf16.msra.mxu0 %v854
    %995 = vmatprep.subr.bf16.mxu0 %v857
    %996 = vmatpush1.bf16.msra.mxu0 %v856
    %997 = vmatprep.subr.bf16.mxu0 %v859
    %998 = vmatpush1.bf16.msra.mxu0 %v858
    %999 = vmatprep.subr.bf16.mxu0 %v861
    %1000 = vmatpush1.bf16.msra.mxu0 %v860
    %1001 = vmatprep.subr.bf16.mxu0 %v863
    %1002 = vmatpush1.bf16.msra.mxu0 %v862
    %1003 = vmatprep.subr.bf16.mxu0 %v865
    %1004 = vmatpush1.bf16.msra.mxu0 %v864
    %1005 = vmatprep.subr.bf16.mxu0 %v867
    %1006 = vmatpush1.bf16.msra.mxu0 %v866
    %1007 = vmatprep.subr.bf16.mxu0 %v869
    %1008 = vmatpush1.bf16.msra.mxu0 %v868
    %1009 = vmatprep.subr.bf16.mxu0 %v871
    %1010 = vmatpush1.bf16.msra.mxu0 %v870
    %1011 = vmatprep.subr.bf16.mxu0 %v873
    %1012 = vmatpush1.bf16.msra.mxu0 %v872
    %1013 = vmatprep.subr.bf16.mxu0 %v875
    %1014 = vmatpush1.bf16.msra.mxu0 %v874
    %1015 = vmatprep.subr.bf16.mxu0 %v877
    %1016 = vmatpush1.bf16.msra.mxu0 %v876
    %1017 = vmatprep.subr.bf16.mxu0 %v879
    %1018 = vmatpush1.bf16.msra.mxu0 %v878
    %1019 = vmatprep.subr.bf16.mxu0 %v881
    %1020 = vmatpush1.bf16.msra.mxu0 %v880
    %1021 = vmatprep.subr.bf16.mxu0 %v883
    %1022 = vmatpush1.bf16.msra.mxu0 %v882
    %1023 = vmatprep.mubr.bf16.mxu0 %v551
    %1024 = vmatmul.mubr.bf16.gmra.mrb[0].mxu0 %v550
    %v1025 = vpop.f32.mrb[0].mxu0
    %v1026 = vadd.f32 %v983, %v1025
    %v1027 = vpop.f32.mrb[0].mxu0
    %v1028 = vadd.f32 %v985, %v1027
    %v1029 = vpop.f32.mrb[0].mxu0
    %v1030 = vadd.f32 %v987, %v1029
    %v1031 = vpop.f32.mrb[0].mxu0
    %v1032 = vadd.f32 %v989, %v1031
    %1033 = vdwg.mxu0
    %v1034 = vmax.f32 %v1026, 0.0
    %v1035 = vmax.f32 %v1028, 0.0
    %v1036 = vmax.f32 %v1030, 0.0
    %v1037 = vmax.f32 %v1032, 0.0
    %v1038 = vpack.c.bf16 %v1036, %v1034
    %v1039 = vpack.c.bf16 %v1037, %v1035
    %v1040 = vld [vmem:[#allocation10] sm:$0xf]
    %v1041 = vld [vmem:[#allocation10 + $0x4] sm:$0xf]
    %v1042 = vld [vmem:[#allocation10 + $0x8] sm:$0xf]
    %v1043 = vld [vmem:[#allocation10 + $0xc] sm:$0xf]
    %v1044 = vld [vmem:[#allocation10 + $0x10] sm:$0xf]
    %v1045 = vld [vmem:[#allocation10 + $0x14] sm:$0xf]
    %v1046 = vld [vmem:[#allocation10 + $0x18] sm:$0xf]
    %v1047 = vld [vmem:[#allocation10 + $0x1c] sm:$0xf]
    %v1048 = vld [vmem:[#allocation10 + $0x20] sm:$0xf]
    %v1049 = vld [vmem:[#allocation10 + $0x24] sm:$0xf]
    %v1050 = vld [vmem:[#allocation10 + $0x28] sm:$0xf]
    %v1051 = vld [vmem:[#allocation10 + $0x2c] sm:$0xf]
    %v1052 = vld [vmem:[#allocation10 + $0x30] sm:$0xf]
    %v1053 = vld [vmem:[#allocation10 + $0x34] sm:$0xf]
    %v1054 = vld [vmem:[#allocation10 + $0x38] sm:$0xf]
    %v1055 = vld [vmem:[#allocation10 + $0x3c] sm:$0xf]
    %v1056 = vld [vmem:[#allocation10 + $0x40] sm:$0xf]
    %v1057 = vld [vmem:[#allocation10 + $0x44] sm:$0xf]
    %v1058 = vld [vmem:[#allocation10 + $0x48] sm:$0xf]
    %v1059 = vld [vmem:[#allocation10 + $0x4c] sm:$0xf]
    %v1060 = vld [vmem:[#allocation10 + $0x50] sm:$0xf]
    %v1061 = vld [vmem:[#allocation10 + $0x54] sm:$0xf]
    %v1062 = vld [vmem:[#allocation10 + $0x58] sm:$0xf]
    %v1063 = vld [vmem:[#allocation10 + $0x5c] sm:$0xf]
    %v1064 = vld [vmem:[#allocation10 + $0x60] sm:$0xf]
    %v1065 = vld [vmem:[#allocation10 + $0x64] sm:$0xf]
    %v1066 = vld [vmem:[#allocation10 + $0x68] sm:$0xf]
    %v1067 = vld [vmem:[#allocation10 + $0x6c] sm:$0xf]
    %v1068 = vld [vmem:[#allocation10 + $0x70] sm:$0xf]
    %v1069 = vld [vmem:[#allocation10 + $0x74] sm:$0xf]
    %v1070 = vld [vmem:[#allocation10 + $0x78] sm:$0xf]
    %v1071 = vld [vmem:[#allocation10 + $0x7c] sm:$0xf]
    %v1072 = vld [vmem:[%s8] sm:$0x1]
    %v1074 = vlaneseq
    %v1075 = vshrl.u32 %v1074, 7
    %v1076 = vsub.s32 0, %v1075
    %v1077 = vrot.slane %v1072, %v1076
    %v1111 = vunpack.c.l.b16 %v1040
    %v1112 = vunpack.c.l.b16 %v1041
    %v1113 = vunpack.c.l.b16 %v1042
    %v1114 = vunpack.c.l.b16 %v1043
    %v1115 = vunpack.c.l.b16 %v1044
    %v1116 = vunpack.c.l.b16 %v1045
    %v1117 = vunpack.c.l.b16 %v1046
    %v1118 = vunpack.c.l.b16 %v1047
    %v1119 = vunpack.c.l.b16 %v1048
    %v1120 = vunpack.c.l.b16 %v1049
    %v1121 = vunpack.c.l.b16 %v1050
    %v1122 = vunpack.c.l.b16 %v1051
    %v1123 = vunpack.c.l.b16 %v1052
    %v1124 = vunpack.c.l.b16 %v1053
    %v1125 = vunpack.c.l.b16 %v1054
    %v1126 = vunpack.c.l.b16 %v1055
    %v1127 = vunpack.c.l.b16 %v1056
    %v1128 = vunpack.c.l.b16 %v1057
    %v1129 = vunpack.c.l.b16 %v1058
    %v1130 = vunpack.c.l.b16 %v1059
    %v1131 = vunpack.c.l.b16 %v1060
    %v1132 = vunpack.c.l.b16 %v1061
    %v1133 = vunpack.c.l.b16 %v1062
    %v1134 = vunpack.c.l.b16 %v1063
    %v1135 = vunpack.c.l.b16 %v1064
    %v1136 = vunpack.c.l.b16 %v1065
    %v1137 = vunpack.c.l.b16 %v1066
    %v1138 = vunpack.c.l.b16 %v1067
    %v1139 = vunpack.c.l.b16 %v1068
    %v1140 = vunpack.c.l.b16 %v1069
    %v1141 = vunpack.c.l.b16 %v1070
    %v1142 = vunpack.c.l.b16 %v1071
    %v1143 = vpack.c.b16 %v1112, %v1111
    %v1144 = vpack.c.b16 %v1114, %v1113
    %v1145 = vpack.c.b16 %v1116, %v1115
    %v1146 = vpack.c.b16 %v1118, %v1117
    %v1147 = vpack.c.b16 %v1120, %v1119
    %v1148 = vpack.c.b16 %v1122, %v1121
    %v1149 = vpack.c.b16 %v1124, %v1123
    %v1150 = vpack.c.b16 %v1126, %v1125
    %v1151 = vpack.c.b16 %v1128, %v1127
    %v1152 = vpack.c.b16 %v1130, %v1129
    %v1153 = vpack.c.b16 %v1132, %v1131
    %v1154 = vpack.c.b16 %v1134, %v1133
    %v1155 = vpack.c.b16 %v1136, %v1135
    %v1156 = vpack.c.b16 %v1138, %v1137
    %v1157 = vpack.c.b16 %v1140, %v1139
    %v1158 = vpack.c.b16 %v1142, %v1141
    %1175 = vmatprep.subr.bf16.mxu0 0
    %1176 = vmatpush1.bf16.msra.mxu0 %v1143
    %1177 = vmatprep.subr.bf16.mxu0 0
    %1178 = vmatpush1.bf16.msra.mxu0 %v1144
    %1179 = vmatprep.subr.bf16.mxu0 0
    %1180 = vmatpush1.bf16.msra.mxu0 %v1145
    %1181 = vmatprep.subr.bf16.mxu0 0
    %1182 = vmatpush1.bf16.msra.mxu0 %v1146
    %1183 = vmatprep.subr.bf16.mxu0 0
    %1184 = vmatpush1.bf16.msra.mxu0 %v1147
    %1185 = vmatprep.subr.bf16.mxu0 0
    %1186 = vmatpush1.bf16.msra.mxu0 %v1148
    %1187 = vmatprep.subr.bf16.mxu0 0
    %1188 = vmatpush1.bf16.msra.mxu0 %v1149
    %1189 = vmatprep.subr.bf16.mxu0 0
    %1190 = vmatpush1.bf16.msra.mxu0 %v1150
    %1191 = vmatprep.subr.bf16.mxu0 0
    %1192 = vmatpush1.bf16.msra.mxu0 %v1151
    %1193 = vmatprep.subr.bf16.mxu0 0
    %1194 = vmatpush1.bf16.msra.mxu0 %v1152
    %1195 = vmatprep.subr.bf16.mxu0 0
    %1196 = vmatpush1.bf16.msra.mxu0 %v1153
    %1197 = vmatprep.subr.bf16.mxu0 0
    %1198 = vmatpush1.bf16.msra.mxu0 %v1154
    %1199 = vmatprep.subr.bf16.mxu0 0
    %1200 = vmatpush1.bf16.msra.mxu0 %v1155
    %1201 = vmatprep.subr.bf16.mxu0 0
    %1202 = vmatpush1.bf16.msra.mxu0 %v1156
    %1203 = vmatprep.subr.bf16.mxu0 0
    %1204 = vmatpush1.bf16.msra.mxu0 %v1157
    %1205 = vmatprep.subr.bf16.mxu0 0
    %1206 = vmatpush1.bf16.msra.mxu0 %v1158
    %1207 = vmatprep.mubr.bf16.mxu0 %v1039
    %1208 = vmatmul.mubr.bf16.gmra.mrb[0].mxu0 %v1038
    %v1209 = vpop.f32.mrb[0].mxu0
    %v1210 = vadd.f32 %v1077, %v1209
    %v1211 = vpop.f32.mrb[0].mxu0
    %v1212 = vpop.f32.mrb[0].mxu0
    %v1213 = vadd.f32 %v1077, %v1212
    %v1214 = vpop.f32.mrb[0].mxu0
    %1215 = vdwg.mxu0
    %1216 = vst [vmem:[#allocation11] sm:$0xff] %v1210
    %1217 = vst [vmem:[#allocation11 + $0x8] sm:$0xff] %v1213
    // Predicated region
    $region58: #{tpu_custom_call.1} parent=1 // pred_check
      _
    $region59: #{tpu_custom_call.1} parent=1 // pred_check_branch
      %1219 = sbr.rel (0) target = $region61
    $region60: #{tpu_custom_call.1} parent=1 // pred_region
      %s1221 = ssub.s32 256, 256
      %1222 = vsyncadd [#allocation4], %s1221
      %s1223 = sshll.u32 [#allocation11], 4
      %s1224 = int_to_ptr.vmem [resolvable:$true] %s1223
      %1229 = dma.vmem_to_hbm [thread:$0]  %s1224, 256, %s9, [#allocation4], 128, 128, 8
    $region61: #{tpu_custom_call.1} parent=1 // pred_fallthru
      _
    // Predicated region
    $region62: #{tpu_custom_call.1} parent=1 // pred_check
      _
    $region63: #{tpu_custom_call.1} parent=1 // pred_check_branch
      %1231 = sbr.rel (0) target = $region65
    $region64: #{tpu_custom_call.1} parent=1 // pred_region
      %1232 = dma.done [#allocation4], 256
    $region65: #{tpu_custom_call.1} parent=1 // pred_fallthru
      _
    %1233 = vsyncpa [#allocation3], 1
    %1234 = vsyncpa [#allocation6], 1
    %1235 = vsyncpa [#allocation9], 1
    %1236 = vsyncpa [#allocation4], 1

</llo_original>
